<compile_context>
chip_gen: v7x
topology: tpu7x:2x2x1
jax: 0.10.0
libtpu: 0.0.40
codegen_flags: <defaults>
</compile_context>

<pallas_src>
import math

import jax
import jax.numpy as jnp
import numpy as np
from jax import lax
from jax.experimental import pallas as pl
from jax.experimental.pallas import tpu as pltpu


# Tile constants: sized so 2x-double-buffered tiles stay well under the 32 MiB
# scoped VMEM of v7x/v6e (and v5e's 16 MiB default). Output tiles are lane-dense
# (tn multiple of 128) for unmasked stores.
RBF_TM = 256       # rows of x1 per tile (multiple of 8)
RBF_TN = 1024      # cols (x2 rows) per tile (multiple of 128) -> 1 MiB f32 out tile
POST_TN = 1024     # posterior tile over N


# ----------------------------------------------------------------------------
# Pallas kernel 1: RBF kernel matrix (tiled):
#   K[i,j] = var * exp(-0.5 * ||x1_i/l - x2_j/l||^2)  (+ jitter on the diagonal)
# The jitter is fused in (SMEM scalar + iota mask) so K_uu needs no extra
# jnp.eye add / HBM round trip. Kernel is EUP/store bound (D is tiny), so the
# matmul trick for the cross term rides for free under the exp + store path.
# ----------------------------------------------------------------------------
def _rbf_kernel(params_ref, x1_ref, x2_ref, k_ref):
    inv_l = params_ref[0]            # 1 / lengthscale
    var = params_ref[1]              # kernel variance
    jitter = params_ref[2]           # diagonal jitter (0.0 for cross-covariances)

    x1 = x1_ref[...] * inv_l                                               # (tm, D)
    x2 = x2_ref[...] * inv_l                                               # (tn, D)
    d = x1.shape[-1]
    sq1 = jnp.sum(x1 * x1, axis=-1, keepdims=True)                         # (tm, 1)
    ones_row = jnp.ones((1, d), dtype=x2.dtype)
    sq2 = lax.dot_general(ones_row, x2 * x2, (((1,), (1,)), ((), ())))     # (1, tn)
    cross = lax.dot_general(x1, x2, (((1,), (1,)), ((), ())))              # (tm, tn)
    d2 = jnp.maximum(sq1 + sq2 - 2.0 * cross, 0.0)
    k = var * jnp.exp(-0.5 * d2)

    tm, tn = k_ref.shape
    row = pl.program_id(0) * tm + lax.broadcasted_iota(jnp.int32, (tm, tn), 0)
    col = pl.program_id(1) * tn + lax.broadcasted_iota(jnp.int32, (tm, tn), 1)
    k_ref[...] = k + jnp.where(row == col, jitter, jnp.float32(0.0))


def rbf_pallas(x1, x2, lengthscale, variance, jitter=0.0):
    n1, d = x1.shape
    n2, _ = x2.shape
    tm = min(RBF_TM, n1)
    tn = min(RBF_TN, n2)
    params = jnp.stack(
        [1.0 / lengthscale, variance, jnp.asarray(jitter, jnp.float32)]
    ).astype(jnp.float32)
    # grid: i (x1 rows) outer, j (x2 rows) inner -> x1 tile stays resident across
    # the inner axis; output tile is lane-dense for unmasked stores.
    grid = (pl.cdiv(n1, tm), pl.cdiv(n2, tn))
    return pl.pallas_call(
        _rbf_kernel,
        out_shape=jax.ShapeDtypeStruct((n1, n2), jnp.float32),
        grid=grid,
        in_specs=[
            pl.BlockSpec(memory_space=pltpu.MemorySpace.SMEM),
            pl.BlockSpec((tm, d), lambda i, j: (i, 0)),
            pl.BlockSpec((tn, d), lambda i, j: (j, 0)),
        ],
        out_specs=pl.BlockSpec((tm, tn), lambda i, j: (i, j)),
        compiler_params=pltpu.CompilerParams(
            dimension_semantics=("parallel", "parallel")),
    )(params, x1.astype(jnp.float32), x2.astype(jnp.float32))


# ----------------------------------------------------------------------------
# Pallas kernel 2 (tiled over N): variational posterior mean / variance from
# A = L^{-1} K_uf plus the MultiOutputGP output scaling.
#   mean     = (m @ A) * sqrt(scale)
#   variance = (kff_diag + (s - 1) @ A^2) * scale      (kff_diag == var for RBF)
# The -sum(A^2) and +s@A^2 terms are fused into a single matvec with (s - 1).
# HBM-bound on reading A; gridded so A's DMA pipelines under compute.
# ----------------------------------------------------------------------------
def _posterior_kernel(params_ref, a_ref, m_ref, sm1_ref, mean_ref, var_ref):
    scale = params_ref[0]
    sqrt_scale = params_ref[1]
    kff = params_ref[2]                                                    # RBF diag = variance
    A = a_ref[...]                                                         # (M, tn)
    A2 = A * A
    mean = jnp.dot(m_ref[...], A, preferred_element_type=jnp.float32)      # (1, tn)
    quad = jnp.dot(sm1_ref[...], A2, preferred_element_type=jnp.float32)   # (1, tn)
    mean_ref[...] = mean * sqrt_scale
    var_ref[...] = (kff + quad) * scale


def posterior_pallas(A, m, s, kff_const, scale):
    M, N = A.shape
    tn = min(POST_TN, N)
    params = jnp.stack([scale, jnp.sqrt(scale), kff_const]).astype(jnp.float32)
    grid = (pl.cdiv(N, tn),)
    mean, var = pl.pallas_call(
        _posterior_kernel,
        out_shape=(jax.ShapeDtypeStruct((1, N), jnp.float32),
                   jax.ShapeDtypeStruct((1, N), jnp.float32)),
        grid=grid,
        in_specs=[
            pl.BlockSpec(memory_space=pltpu.MemorySpace.SMEM),
            pl.BlockSpec((M, tn), lambda j: (0, j)),
            pl.BlockSpec((1, M), lambda j: (0, 0)),
            pl.BlockSpec((1, M), lambda j: (0, 0)),
        ],
        out_specs=(pl.BlockSpec((1, tn), lambda j: (0, j)),
                   pl.BlockSpec((1, tn), lambda j: (0, j))),
        compiler_params=pltpu.CompilerParams(dimension_semantics=("parallel",)),
    )(params,
      A.astype(jnp.float32),
      m.reshape(1, M).astype(jnp.float32),
      (s - 1.0).reshape(1, M).astype(jnp.float32))
    return mean[0], var[0]


# ----------------------------------------------------------------------------
# MultiOutputGP forward (RBF base GP, sparse variational posterior)
# ----------------------------------------------------------------------------
def multi_output_gp_forward(x, params, output_idx):
    Z = params["inducing_points"]                       # (M, D)
    lengthscale = jnp.exp(params["log_lengthscale"])
    variance = jnp.exp(params["log_variance"])

    # K_uu with the 1e-6 jitter fused into the kernel (no jnp.eye materialization).
    K_uu = rbf_pallas(Z, Z, lengthscale, variance, jitter=1e-6)
    K_uf = rbf_pallas(Z, x, lengthscale, variance)      # (M, N)
    # Analytic RBF diagonal: K(x,x)_ii == variance exactly -> no O(N^2) kernel
    # launch, no jnp.diagonal gather, no cancellation error.
    kff_const = variance

    # TODO(synk): Cholesky factorization and triangular solve have no clean Pallas
    # equivalent; they are computed with plain JAX linalg here.
    L_uu = jnp.linalg.cholesky(K_uu)
    A = jax.scipy.linalg.solve_triangular(L_uu, K_uf, lower=True)   # (M, N)

    m = params["variational_mean"]                      # (M,)
    s = jnp.exp(params["variational_logvar"])           # (M,)

    # MultiOutputGP output scaling (tiny parameter-side compute)
    W_row = params["W"][output_idx]                     # (rank,)
    output_scale = jnp.sum(W_row ** 2) + params["kappa"][output_idx]

    return posterior_pallas(A, m, s, kff_const, output_scale)


# ----------------------------------------------------------------------------
# Pure-JAX reference (mirrors the PyTorch module) for correctness check
# ----------------------------------------------------------------------------
def reference_forward(x, params, output_idx):
    Z = params["inducing_points"]
    l = jnp.exp(params["log_lengthscale"])
    v = jnp.exp(params["log_variance"])

    def rbf(a, b):
        d2 = jnp.sum((a[:, None, :] / l - b[None, :, :] / l) ** 2, axis=-1)
        return v * jnp.exp(-0.5 * d2)

    M = Z.shape[0]
    K_uu = rbf(Z, Z) + jnp.eye(M, dtype=jnp.float32) * 1e-6
    K_uf = rbf(Z, x)
    K_ff_diag = jnp.full((x.shape[0],), v, dtype=jnp.float32)   # exact RBF diagonal
    L = jnp.linalg.cholesky(K_uu)
    A = jax.scipy.linalg.solve_triangular(L, K_uf, lower=True)
    mean = A.T @ params["variational_mean"]
    s = jnp.exp(params["variational_logvar"])
    var_contrib = jnp.sum(A ** 2, axis=0)
    quad = jnp.sum(s[:, None] * A ** 2, axis=0)
    var = K_ff_diag - var_contrib + quad
    scale = jnp.sum(params["W"][output_idx] ** 2) + params["kappa"][output_idx]
    return mean * jnp.sqrt(scale), var * scale


if __name__ == "__main__":
    feature_dim = 16
    num_inducing = 64
    num_outputs = 4
    rank = 5
    output_idx = 1

    key = jax.random.PRNGKey(0)
    k_ind, k_w, k_small, k_med = jax.random.split(key, 4)

    params = {
        "log_lengthscale": jnp.array(math.log(1.0), dtype=jnp.float32),
        "log_variance": jnp.array(math.log(1.0), dtype=jnp.float32),
        "log_noise_variance": jnp.array(math.log(0.1), dtype=jnp.float32),
        "inducing_points": (jax.random.normal(k_ind, (num_inducing, feature_dim),
                                              dtype=jnp.float32) * 0.1),
        "variational_mean": jnp.zeros((num_inducing,), dtype=jnp.float32),
        "variational_logvar": jnp.zeros((num_inducing,), dtype=jnp.float32),
        "W": jax.random.normal(k_w, (num_outputs, rank), dtype=jnp.float32) * 0.1,
        "kappa": jnp.ones((num_outputs,), dtype=jnp.float32) * 0.1,
    }

    # --- small case (matches the module's typical usage) ---
    x_small = jax.random.normal(k_small, (8, feature_dim), dtype=jnp.float32)
    mean, var = multi_output_gp_forward(x_small, params, output_idx)
    mean = jax.block_until_ready(mean)
    var = jax.block_until_ready(var)
    ref_mean, ref_var = reference_forward(x_small, params, output_idx)
    assert mean.shape == (8,) and var.shape == (8,)
    np.testing.assert_allclose(np.asarray(mean), np.asarray(ref_mean), rtol=2e-3, atol=2e-3)
    np.testing.assert_allclose(np.asarray(var), np.asarray(ref_var), rtol=2e-3, atol=2e-3)

    # --- medium case: exercises the multi-block grids (grid > 1 on the N axis) ---
    n_med = 2048
    x_med = jax.random.normal(k_med, (n_med, feature_dim), dtype=jnp.float32)
    mean_m, var_m = multi_output_gp_forward(x_med, params, output_idx)
    mean_m = jax.block_until_ready(mean_m)
    var_m = jax.block_until_ready(var_m)
    ref_mean_m, ref_var_m = reference_forward(x_med, params, output_idx)
    assert mean_m.shape == (n_med,) and var_m.shape == (n_med,)
    np.testing.assert_allclose(np.asarray(mean_m), np.asarray(ref_mean_m), rtol=2e-3, atol=2e-3)
    np.testing.assert_allclose(np.asarray(var_m), np.asarray(ref_var_m), rtol=2e-3, atol=2e-3)

    print("KERNEL_OK")
</pallas_src>

<mosaic_0001>
module attributes {stable_mosaic.version = 11 : i64} {
  func.func @_rbf_kernel(%arg0: i32, %arg1: i32, %arg2: memref<3xf32, #tpu.memory_space<smem>>, %arg3: memref<64x16xf32, #tpu.memory_space<vmem>>, %arg4: memref<64x16xf32, #tpu.memory_space<vmem>>, %arg5: memref<64x64xf32, #tpu.memory_space<vmem>>) attributes {dimension_semantics = [#tpu.dimension_semantics<parallel>, #tpu.dimension_semantics<parallel>], iteration_bounds = array<i64: 1, 1>, scalar_prefetch = 0 : i64, scratch_operands = 0 : i64, tpu.core_type = #tpu.core_type<tc>, window_params = [{transform_indices = @transform_0, window_bounds = array<i64: 3>}, {transform_indices = @transform_1, window_bounds = array<i64: 64, 16>}, {transform_indices = @transform_2, window_bounds = array<i64: 64, 16>}, {transform_indices = @transform_3, window_bounds = array<i64: 64, 64>}]} {
    %c0 = arith.constant 0 : index
    %0 = memref.load %arg2[%c0] : memref<3xf32, #tpu.memory_space<smem>>
    %c1 = arith.constant 1 : index
    %1 = memref.load %arg2[%c1] : memref<3xf32, #tpu.memory_space<smem>>
    %c2 = arith.constant 2 : index
    %2 = memref.load %arg2[%c2] : memref<3xf32, #tpu.memory_space<smem>>
    %c0_0 = arith.constant 0 : index
    %c0_1 = arith.constant 0 : index
    %3 = vector.load %arg3[%c0_0, %c0_1] : memref<64x16xf32, #tpu.memory_space<vmem>>, vector<64x16xf32>
    %4 = vector.broadcast %0 : f32 to vector<64x16xf32>
    %5 = arith.mulf %3, %4 : vector<64x16xf32>
    %c0_2 = arith.constant 0 : index
    %c0_3 = arith.constant 0 : index
    %6 = vector.load %arg4[%c0_2, %c0_3] : memref<64x16xf32, #tpu.memory_space<vmem>>, vector<64x16xf32>
    %7 = vector.broadcast %0 : f32 to vector<64x16xf32>
    %8 = arith.mulf %6, %7 : vector<64x16xf32>
    %9 = arith.mulf %5, %5 : vector<64x16xf32>
    %cst = arith.constant dense<0.000000e+00> : vector<64xf32>
    %10 = vector.multi_reduction <add>, %9, %cst [1] : vector<64x16xf32> to vector<64xf32>
    %11 = vector.shape_cast %10 : vector<64xf32> to vector<64x1xf32>
    %cst_4 = arith.constant 1.000000e+00 : f32
    %12 = vector.broadcast %cst_4 : f32 to vector<1x16xf32>
    %13 = arith.mulf %8, %8 : vector<64x16xf32>
    %cst_5 = arith.constant dense<0.000000e+00> : vector<1x64xf32>
    %14 = tpu.matmul %12, %13, %cst_5 {dimension_numbers = #tpu.dot_dimension_numbers<[1], [1], [0], [0], [0, 0, 1, 0], [], []>} : vector<1x16xf32>, vector<64x16xf32>, vector<1x64xf32> -> vector<1x64xf32>
    %cst_6 = arith.constant dense<0.000000e+00> : vector<64x64xf32>
    %15 = tpu.matmul %5, %8, %cst_6 {dimension_numbers = #tpu.dot_dimension_numbers<[1], [1], [0], [0], [0, 0, 1, 0], [], []>} : vector<64x16xf32>, vector<64x16xf32>, vector<64x64xf32> -> vector<64x64xf32>
    %16 = vector.broadcast %11 : vector<64x1xf32> to vector<64x64xf32>
    %17 = vector.broadcast %14 : vector<1x64xf32> to vector<64x64xf32>
    %18 = arith.addf %16, %17 : vector<64x64xf32>
    %cst_7 = arith.constant 2.000000e+00 : f32
    %19 = vector.broadcast %cst_7 : f32 to vector<64x64xf32>
    %20 = arith.mulf %19, %15 : vector<64x64xf32>
    %21 = arith.subf %18, %20 : vector<64x64xf32>
    %cst_8 = arith.constant 0.000000e+00 : f32
    %22 = vector.broadcast %cst_8 : f32 to vector<64x64xf32>
    %23 = arith.maximumf %21, %22 : vector<64x64xf32>
    %cst_9 = arith.constant -5.000000e-01 : f32
    %24 = vector.broadcast %cst_9 : f32 to vector<64x64xf32>
    %25 = arith.mulf %24, %23 : vector<64x64xf32>
    %26 = math.exp %25 : vector<64x64xf32>
    %27 = vector.broadcast %1 : f32 to vector<64x64xf32>
    %28 = arith.mulf %27, %26 : vector<64x64xf32>
    %c64_i32 = arith.constant 64 : i32
    %29 = arith.muli %arg0, %c64_i32 : i32
    %30 = tpu.iota {dimensions = array<i32: 0>} : vector<64x64xi32>
    %31 = vector.broadcast %29 : i32 to vector<64x64xi32>
    %32 = arith.addi %31, %30 : vector<64x64xi32>
    %c64_i32_10 = arith.constant 64 : i32
    %33 = arith.muli %arg1, %c64_i32_10 : i32
    %34 = tpu.iota {dimensions = array<i32: 1>} : vector<64x64xi32>
    %35 = vector.broadcast %33 : i32 to vector<64x64xi32>
    %36 = arith.addi %35, %34 : vector<64x64xi32>
    %37 = arith.cmpi eq, %32, %36 : vector<64x64xi32>
    %cst_11 = arith.constant 0.000000e+00 : f32
    %38 = vector.broadcast %2 : f32 to vector<64x64xf32>
    %39 = vector.broadcast %cst_11 : f32 to vector<64x64xf32>
    %40 = arith.select %37, %38, %39 : vector<64x64xi1>, vector<64x64xf32>
    %41 = arith.addf %28, %40 : vector<64x64xf32>
    %c0_12 = arith.constant 0 : index
    %c0_13 = arith.constant 0 : index
    %42 = vector.load %arg5[%c0_12, %c0_13] : memref<64x64xf32, #tpu.memory_space<vmem>>, vector<64x64xf32>
    tpu.vector_store %arg5[%c0_12, %c0_13], %41 {strides = array<i32>} : memref<64x64xf32, #tpu.memory_space<vmem>>, vector<64x64xf32>,
    return
  }
  func.func @transform_0(%arg0: i32, %arg1: i32) -> i32 {
    %c0_i32 = arith.constant 0 : i32
    %c0_i32_0 = arith.constant 0 : i32
    return %c0_i32 : i32
  }
  func.func @transform_1(%arg0: i32, %arg1: i32) -> (i32, i32) {
    %c0_i32 = arith.constant 0 : i32
    %c0_i32_0 = arith.constant 0 : i32
    return %arg0, %c0_i32 : i32, i32
  }
  func.func @transform_2(%arg0: i32, %arg1: i32) -> (i32, i32) {
    %c0_i32 = arith.constant 0 : i32
    %c0_i32_0 = arith.constant 0 : i32
    return %arg1, %c0_i32 : i32, i32
  }
  func.func @transform_3(%arg0: i32, %arg1: i32) -> (i32, i32) {
    %c0_i32 = arith.constant 0 : i32
    return %arg0, %arg1 : i32, i32
  }
}

</mosaic_0001>

<llo_original>
// kernel: tpu_custom_call.1
$region0: #{tpu_custom_call.1}
  #allocation0 [shape = 'u32[]', space=smem, size = 0x4, offset = 0x4, fixed_abs, tag = 'smem constant byte address 0x4 - core index']
  #allocation1 [shape = 'u32[144,128]{1,0:T(1,128)}', space=vmem, size = 0x12000, scoped, tag = 'internal scratch']
  %s0 = inlined_call_operand.vmem [shape: f32[3], index: 0, kind: input, shape index: {}]
  %s1 = inlined_call_operand.vmem [shape: f32[64,16], index: 1, kind: input, shape index: {}]
  %s2 = inlined_call_operand.vmem [shape: f32[64,16], index: 2, kind: input, shape index: {}]
  %s3 = inlined_call_operand.hbm [shape: f32[64,64], index: 3, kind: output, shape index: {}]
  %s4 = sld [smem:[#allocation0]]
  $region26: #{tpu_custom_call.1} parent=0
    _
  %s6 = ssub.s32 1, %s4
  %s7 = scalar_select 0, %s6, %s4
  $region1: #{tpu_custom_call.1} parent=0
    #allocation2 [shape = 'u8[512]{0}', space=smem, size = 0x200, scoped, tag = 'input window, operand 0, single buffered']
    #allocation3 [shape = 's32[1]{0}', space=sflag, size = 0x4, scoped, tag = 'scoped memory for tpu_custom_call.1']
    #allocation4 [shape = 's32[1]{0}', space=sflag, size = 0x4, scoped, tag = 'scoped memory for tpu_custom_call.1']
    #allocation5 [shape = 'u8[32768]{0}', space=vmem, size = 0x8000, scoped, tag = 'output window, operand 0, single buffered']
    %8 = vsyncpa [#allocation4], 0
    %9 = vsyncpa [#allocation3], 0
    // Predicated region
    $region2: #{tpu_custom_call.1} parent=1 // pred_check
      _
    $region3: #{tpu_custom_call.1} parent=1 // pred_check_branch
      %11 = sbr.rel (0) target = $region5
    $region4: #{tpu_custom_call.1} parent=1 // pred_region
      %s13 = ssub.s32 16, 16
      %14 = vsyncadd [#allocation4], %s13
      %s16 = sshll.u32 %s0, 4
      %s17 = int_to_ptr.vmem [resolvable:$true] %s16
      %19 = dma.vmem_to_smem %s17, 16, [#allocation2], [#allocation4]
    $region5: #{tpu_custom_call.1} parent=1 // pred_fallthru
      _
    // Predicated region
    $region6: #{tpu_custom_call.1} parent=1 // pred_check
      _
    $region7: #{tpu_custom_call.1} parent=1 // pred_check_branch
      %21 = sbr.rel (0) target = $region9
    $region8: #{tpu_custom_call.1} parent=1 // pred_region
      _
    $region9: #{tpu_custom_call.1} parent=1 // pred_fallthru
      _
    // Predicated region
    $region10: #{tpu_custom_call.1} parent=1 // pred_check
      _
    $region11: #{tpu_custom_call.1} parent=1 // pred_check_branch
      %23 = sbr.rel (0) target = $region13
    $region12: #{tpu_custom_call.1} parent=1 // pred_region
      _
    $region13: #{tpu_custom_call.1} parent=1 // pred_fallthru
      _
    // Predicated region
    $region14: #{tpu_custom_call.1} parent=1 // pred_check
      _
    $region15: #{tpu_custom_call.1} parent=1 // pred_check_branch
      %25 = sbr.rel (0) target = $region17
    $region16: #{tpu_custom_call.1} parent=1 // pred_region
      %26 = dma.done [#allocation4], 16
    $region17: #{tpu_custom_call.1} parent=1 // pred_fallthru
      _
    %27 = sfence
    %s28 = sld [smem:[#allocation2]]
    %s29 = sld [smem:[#allocation2 + $0x1]]
    %s30 = sld [smem:[#allocation2 + $0x2]]
    %v31 = vld [vmem:[%s1] sm:$0xff]
    %v32 = vld [vmem:[%s1 + $0x8] sm:$0xff]
    %v33 = vld [vmem:[%s1 + $0x10] sm:$0xff]
    %v34 = vld [vmem:[%s1 + $0x18] sm:$0xff]
    %v35 = vld [vmem:[%s1 + $0x20] sm:$0xff]
    %v36 = vld [vmem:[%s1 + $0x28] sm:$0xff]
    %v37 = vld [vmem:[%s1 + $0x30] sm:$0xff]
    %v38 = vld [vmem:[%s1 + $0x38] sm:$0xff]
    %v39 = vstv %s28
    %v40 = vmul.f32 %v31, %v39
    %v41 = vmul.f32 %v32, %v39
    %v42 = vmul.f32 %v33, %v39
    %v43 = vmul.f32 %v34, %v39
    %v44 = vmul.f32 %v35, %v39
    %v45 = vmul.f32 %v36, %v39
    %v46 = vmul.f32 %v37, %v39
    %v47 = vmul.f32 %v38, %v39
    %v48 = vld [vmem:[%s2] sm:$0xff]
    %v49 = vld [vmem:[%s2 + $0x8] sm:$0xff]
    %v50 = vld [vmem:[%s2 + $0x10] sm:$0xff]
    %v51 = vld [vmem:[%s2 + $0x18] sm:$0xff]
    %v52 = vld [vmem:[%s2 + $0x20] sm:$0xff]
    %v53 = vld [vmem:[%s2 + $0x28] sm:$0xff]
    %v54 = vld [vmem:[%s2 + $0x30] sm:$0xff]
    %v55 = vld [vmem:[%s2 + $0x38] sm:$0xff]
    %v56 = vmul.f32 %v48, %v39
    %v57 = vmul.f32 %v49, %v39
    %v58 = vmul.f32 %v50, %v39
    %v59 = vmul.f32 %v51, %v39
    %v60 = vmul.f32 %v52, %v39
    %v61 = vmul.f32 %v53, %v39
    %v62 = vmul.f32 %v54, %v39
    %v63 = vmul.f32 %v55, %v39
    %v64 = vmul.f32 %v40, %v40
    %v65 = vmul.f32 %v41, %v41
    %v66 = vmul.f32 %v42, %v42
    %v67 = vmul.f32 %v43, %v43
    %v68 = vmul.f32 %v44, %v44
    %v69 = vmul.f32 %v45, %v45
    %v70 = vmul.f32 %v46, %v46
    %v71 = vmul.f32 %v47, %v47
    %vm72 = vcmask 130048
    %v73 = vsel %vm72, %v64, 0.0
    %74 = vadd.xlane.f32.xlu0 %v73
    %v75 = vpop.xlane.xlu0 %74
    %v76 = vsel %vm72, %v65, 0.0
    %77 = vadd.xlane.f32.xlu0 %v76
    %v78 = vpop.xlane.xlu0 %77
    %v79 = vsel %vm72, %v66, 0.0
    %80 = vadd.xlane.f32.xlu0 %v79
    %v81 = vpop.xlane.xlu0 %80
    %v82 = vsel %vm72, %v67, 0.0
    %83 = vadd.xlane.f32.xlu0 %v82
    %v84 = vpop.xlane.xlu0 %83
    %v85 = vsel %vm72, %v68, 0.0
    %86 = vadd.xlane.f32.xlu0 %v85
    %v87 = vpop.xlane.xlu0 %86
    %v88 = vsel %vm72, %v69, 0.0
    %89 = vadd.xlane.f32.xlu0 %v88
    %v90 = vpop.xlane.xlu0 %89
    %v91 = vsel %vm72, %v70, 0.0
    %92 = vadd.xlane.f32.xlu0 %v91
    %v93 = vpop.xlane.xlu0 %92
    %v94 = vsel %vm72, %v71, 0.0
    %95 = vadd.xlane.f32.xlu0 %v94
    %v96 = vpop.xlane.xlu0 %95
    %v97 = vmul.f32 %v56, %v56
    %v98 = vmul.f32 %v57, %v57
    %v99 = vmul.f32 %v58, %v58
    %v100 = vmul.f32 %v59, %v59
    %v101 = vmul.f32 %v60, %v60
    %v102 = vmul.f32 %v61, %v61
    %v103 = vmul.f32 %v62, %v62
    %v104 = vmul.f32 %v63, %v63
    %v106 = vsel %vm72, 1.0, 0
    %v109 = vsel %vm72, %v97, 0
    %v112 = vsel %vm72, %v98, 0
    %v115 = vsel %vm72, %v99, 0
    %v118 = vsel %vm72, %v100, 0
    %v121 = vsel %vm72, %v101, 0
    %v124 = vsel %vm72, %v102, 0
    %v127 = vsel %vm72, %v103, 0
    %v130 = vsel %vm72, %v104, 0
    %132 = vmatprep.subr.mxu0 0.0
    %133 = vmatpush1.xpose.msra.mxu0 %v109
    %134 = vmatprep.subr.mxu0 0.0
    %135 = vmatpush1.xpose.msra.mxu0 %v112
    %136 = vmatprep.subr.mxu0 0.0
    %137 = vmatpush1.xpose.msra.mxu0 %v115
    %138 = vmatprep.subr.mxu0 0.0
    %139 = vmatpush1.xpose.msra.mxu0 %v118
    %140 = vmatprep.subr.mxu0 0.0
    %141 = vmatpush1.xpose.msra.mxu0 %v121
    %142 = vmatprep.subr.mxu0 0.0
    %143 = vmatpush1.xpose.msra.mxu0 %v124
    %144 = vmatprep.subr.mxu0 0.0
    %145 = vmatpush1.xpose.msra.mxu0 %v127
    %146 = vmatprep.subr.mxu0 0.0
    %147 = vmatpush1.xpose.msra.mxu0 %v130
    %148 = vmatprep.subr.mxu0 0.0
    %149 = vmatpush1.xpose.msra.mxu0 0.0
    %150 = vmatprep.subr.mxu0 0.0
    %151 = vmatpush1.xpose.msra.mxu0 0.0
    %152 = vmatprep.subr.mxu0 0.0
    %153 = vmatpush1.xpose.msra.mxu0 0.0
    %154 = vmatprep.subr.mxu0 0.0
    %155 = vmatpush1.xpose.msra.mxu0 0.0
    %156 = vmatprep.subr.mxu0 0.0
    %157 = vmatpush1.xpose.msra.mxu0 0.0
    %158 = vmatprep.subr.mxu0 0.0
    %159 = vmatpush1.xpose.msra.mxu0 0.0
    %160 = vmatprep.subr.mxu0 0.0
    %161 = vmatpush1.xpose.msra.mxu0 0.0
    %162 = vmatprep.subr.mxu0 0.0
    %163 = vmatpush1.xpose.msra.mxu0 0.0
    %164 = vmatprep.subr.mxu0 0.0
    %165 = vmatpush1.xpose.msra.mxu0 0.0
    %166 = vmatprep.subr.mxu0 0.0
    %167 = vmatpush1.xpose.msra.mxu0 0.0
    %168 = vmatprep.subr.mxu0 0.0
    %169 = vmatpush1.xpose.msra.mxu0 0.0
    %170 = vmatprep.subr.mxu0 0.0
    %171 = vmatpush1.xpose.msra.mxu0 0.0
    %172 = vmatprep.subr.mxu0 0.0
    %173 = vmatpush1.xpose.msra.mxu0 0.0
    %174 = vmatprep.subr.mxu0 0.0
    %175 = vmatpush1.xpose.msra.mxu0 0.0
    %176 = vmatprep.subr.mxu0 0.0
    %177 = vmatpush1.xpose.msra.mxu0 0.0
    %178 = vmatprep.subr.mxu0 0.0
    %179 = vmatpush1.xpose.msra.mxu0 0.0
    %180 = vmatprep.subr.mxu0 0.0
    %181 = vmatpush1.xpose.msra.mxu0 0.0
    %182 = vmatprep.subr.mxu0 0.0
    %183 = vmatpush1.xpose.msra.mxu0 0.0
    %184 = vmatprep.subr.mxu0 0.0
    %185 = vmatpush1.xpose.msra.mxu0 0.0
    %186 = vmatprep.subr.mxu0 0.0
    %187 = vmatpush1.xpose.msra.mxu0 0.0
    %188 = vmatprep.subr.mxu0 0.0
    %189 = vmatpush1.xpose.msra.mxu0 0.0
    %190 = vmatprep.subr.mxu0 0.0
    %191 = vmatpush1.xpose.msra.mxu0 0.0
    %192 = vmatprep.subr.mxu0 0.0
    %193 = vmatpush1.xpose.msra.mxu0 0.0
    %194 = vmatprep.subr.mxu0 0.0
    %195 = vmatpush1.xpose.msra.mxu0 0.0
    %196 = vmatprep.mubr.f32.mxu0 0.0
    %197 = vmatmul.mubr.f32.gmra.mrb[0].mxu0 %v106
    %v198 = vpop.f32.mrb[0].mxu0
    %v199 = vadd.f32 0.0, %v198
    %v200 = vpop.f32.mrb[0].mxu0
    %201 = vdwg.mxu0
    %v203 = vsel %vm72, %v40, 0
    %v206 = vsel %vm72, %v41, 0
    %v209 = vsel %vm72, %v42, 0
    %v212 = vsel %vm72, %v43, 0
    %v215 = vsel %vm72, %v44, 0
    %v218 = vsel %vm72, %v45, 0
    %v221 = vsel %vm72, %v46, 0
    %v224 = vsel %vm72, %v47, 0
    %v227 = vsel %vm72, %v56, 0
    %v230 = vsel %vm72, %v57, 0
    %v233 = vsel %vm72, %v58, 0
    %v236 = vsel %vm72, %v59, 0
    %v239 = vsel %vm72, %v60, 0
    %v242 = vsel %vm72, %v61, 0
    %v245 = vsel %vm72, %v62, 0
    %v248 = vsel %vm72, %v63, 0
    %250 = vmatprep.subr.mxu0 0.0
    %251 = vmatpush1.xpose.msra.mxu0 %v227
    %252 = vmatprep.subr.mxu0 0.0
    %253 = vmatpush1.xpose.msra.mxu0 %v230
    %254 = vmatprep.subr.mxu0 0.0
    %255 = vmatpush1.xpose.msra.mxu0 %v233
    %256 = vmatprep.subr.mxu0 0.0
    %257 = vmatpush1.xpose.msra.mxu0 %v236
    %258 = vmatprep.subr.mxu0 0.0
    %259 = vmatpush1.xpose.msra.mxu0 %v239
    %260 = vmatprep.subr.mxu0 0.0
    %261 = vmatpush1.xpose.msra.mxu0 %v242
    %262 = vmatprep.subr.mxu0 0.0
    %263 = vmatpush1.xpose.msra.mxu0 %v245
    %264 = vmatprep.subr.mxu0 0.0
    %265 = vmatpush1.xpose.msra.mxu0 %v248
    %266 = vmatprep.subr.mxu0 0.0
    %267 = vmatpush1.xpose.msra.mxu0 0.0
    %268 = vmatprep.subr.mxu0 0.0
    %269 = vmatpush1.xpose.msra.mxu0 0.0
    %270 = vmatprep.subr.mxu0 0.0
    %271 = vmatpush1.xpose.msra.mxu0 0.0
    %272 = vmatprep.subr.mxu0 0.0
    %273 = vmatpush1.xpose.msra.mxu0 0.0
    %274 = vmatprep.subr.mxu0 0.0
    %275 = vmatpush1.xpose.msra.mxu0 0.0
    %276 = vmatprep.subr.mxu0 0.0
    %277 = vmatpush1.xpose.msra.mxu0 0.0
    %278 = vmatprep.subr.mxu0 0.0
    %279 = vmatpush1.xpose.msra.mxu0 0.0
    %280 = vmatprep.subr.mxu0 0.0
    %281 = vmatpush1.xpose.msra.mxu0 0.0
    %282 = vmatprep.subr.mxu0 0.0
    %283 = vmatpush1.xpose.msra.mxu0 0.0
    %284 = vmatprep.subr.mxu0 0.0
    %285 = vmatpush1.xpose.msra.mxu0 0.0
    %286 = vmatprep.subr.mxu0 0.0
    %287 = vmatpush1.xpose.msra.mxu0 0.0
    %288 = vmatprep.subr.mxu0 0.0
    %289 = vmatpush1.xpose.msra.mxu0 0.0
    %290 = vmatprep.subr.mxu0 0.0
    %291 = vmatpush1.xpose.msra.mxu0 0.0
    %292 = vmatprep.subr.mxu0 0.0
    %293 = vmatpush1.xpose.msra.mxu0 0.0
    %294 = vmatprep.subr.mxu0 0.0
    %295 = vmatpush1.xpose.msra.mxu0 0.0
    %296 = vmatprep.subr.mxu0 0.0
    %297 = vmatpush1.xpose.msra.mxu0 0.0
    %298 = vmatprep.subr.mxu0 0.0
    %299 = vmatpush1.xpose.msra.mxu0 0.0
    %300 = vmatprep.subr.mxu0 0.0
    %301 = vmatpush1.xpose.msra.mxu0 0.0
    %302 = vmatprep.subr.mxu0 0.0
    %303 = vmatpush1.xpose.msra.mxu0 0.0
    %304 = vmatprep.subr.mxu0 0.0
    %305 = vmatpush1.xpose.msra.mxu0 0.0
    %306 = vmatprep.subr.mxu0 0.0
    %307 = vmatpush1.xpose.msra.mxu0 0.0
    %308 = vmatprep.subr.mxu0 0.0
    %309 = vmatpush1.xpose.msra.mxu0 0.0
    %310 = vmatprep.subr.mxu0 0.0
    %311 = vmatpush1.xpose.msra.mxu0 0.0
    %312 = vmatprep.subr.mxu0 0.0
    %313 = vmatpush1.xpose.msra.mxu0 0.0
    %314 = vmatprep.mubr.f32.mxu0 0.0
    %315 = vmatmul.mubr.f32.gmra.mrb[0].mxu0 %v203
    %v316 = vpop.f32.mrb[0].mxu0
    %v317 = vadd.f32 0.0, %v316
    %v318 = vpop.f32.mrb[0].mxu0
    %319 = vmatprep.mubr.f32.mxu0 0.0
    %320 = vmatmul.mubr.f32.gmra.mrb[0].mxu0 %v206
    %v321 = vpop.f32.mrb[0].mxu0
    %v322 = vadd.f32 0.0, %v321
    %v323 = vpop.f32.mrb[0].mxu0
    %324 = vmatprep.mubr.f32.mxu0 0.0
    %325 = vmatmul.mubr.f32.gmra.mrb[0].mxu0 %v209
    %v326 = vpop.f32.mrb[0].mxu0
    %v327 = vadd.f32 0.0, %v326
    %v328 = vpop.f32.mrb[0].mxu0
    %329 = vmatprep.mubr.f32.mxu0 0.0
    %330 = vmatmul.mubr.f32.gmra.mrb[0].mxu0 %v212
    %v331 = vpop.f32.mrb[0].mxu0
    %v332 = vadd.f32 0.0, %v331
    %v333 = vpop.f32.mrb[0].mxu0
    %334 = vmatprep.mubr.f32.mxu0 0.0
    %335 = vmatmul.mubr.f32.gmra.mrb[0].mxu0 %v215
    %v336 = vpop.f32.mrb[0].mxu0
    %v337 = vadd.f32 0.0, %v336
    %v338 = vpop.f32.mrb[0].mxu0
    %339 = vmatprep.mubr.f32.mxu0 0.0
    %340 = vmatmul.mubr.f32.gmra.mrb[0].mxu0 %v218
    %v341 = vpop.f32.mrb[0].mxu0
    %v342 = vadd.f32 0.0, %v341
    %v343 = vpop.f32.mrb[0].mxu0
    %344 = vmatprep.mubr.f32.mxu0 0.0
    %345 = vmatmul.mubr.f32.gmra.mrb[0].mxu0 %v221
    %v346 = vpop.f32.mrb[0].mxu0
    %v347 = vadd.f32 0.0, %v346
    %v348 = vpop.f32.mrb[0].mxu0
    %349 = vmatprep.mubr.f32.mxu0 0.0
    %350 = vmatmul.mubr.f32.gmra.mrb[0].mxu0 %v224
    %v351 = vpop.f32.mrb[0].mxu0
    %v352 = vadd.f32 0.0, %v351
    %v353 = vpop.f32.mrb[0].mxu0
    %354 = vdwg.mxu0
    %v355 = vlaneseq
    %v356 = vshrl.u32 %v355, 7
    %v357 = vsub.s32 0, %v356
    %v358 = vrot.slane %v199, %v357
    %v359 = vadd.f32 %v75, %v358
    %v360 = vadd.f32 %v78, %v358
    %v361 = vadd.f32 %v81, %v358
    %v362 = vadd.f32 %v84, %v358
    %v363 = vadd.f32 %v87, %v358
    %v364 = vadd.f32 %v90, %v358
    %v365 = vadd.f32 %v93, %v358
    %v366 = vadd.f32 %v96, %v358
    %v367 = vmul.f32 %v317, 2.0
    %v368 = vmul.f32 %v322, 2.0
    %v369 = vmul.f32 %v327, 2.0
    %v370 = vmul.f32 %v332, 2.0
    %v371 = vmul.f32 %v337, 2.0
    %v372 = vmul.f32 %v342, 2.0
    %v373 = vmul.f32 %v347, 2.0
    %v374 = vmul.f32 %v352, 2.0
    %v375 = vsub.f32 %v359, %v367
    %v376 = vsub.f32 %v360, %v368
    %v377 = vsub.f32 %v361, %v369
    %v378 = vsub.f32 %v362, %v370
    %v379 = vsub.f32 %v363, %v371
    %v380 = vsub.f32 %v364, %v372
    %v381 = vsub.f32 %v365, %v373
    %v382 = vsub.f32 %v366, %v374
    %v383 = vmax.f32 %v375, 0.0
    %v384 = vmax.f32 %v376, 0.0
    %v385 = vmax.f32 %v377, 0.0
    %v386 = vmax.f32 %v378, 0.0
    %v387 = vmax.f32 %v379, 0.0
    %v388 = vmax.f32 %v380, 0.0
    %v389 = vmax.f32 %v381, 0.0
    %v390 = vmax.f32 %v382, 0.0
    %v391 = vmul.f32 %v383, -0.5
    %v392 = vmul.f32 %v384, -0.5
    %v393 = vmul.f32 %v385, -0.5
    %v394 = vmul.f32 %v386, -0.5
    %v395 = vmul.f32 %v387, -0.5
    %v396 = vmul.f32 %v388, -0.5
    %v397 = vmul.f32 %v389, -0.5
    %v398 = vmul.f32 %v390, -0.5
    %v399 = vmul.f32 %v391, 1.442695
    %v400 = vpow.pop %v399
    %v401 = vmul.f32 %v392, 1.442695
    %v402 = vpow.pop %v401
    %v403 = vmul.f32 %v393, 1.442695
    %v404 = vpow.pop %v403
    %v405 = vmul.f32 %v394, 1.442695
    %v406 = vpow.pop %v405
    %v407 = vmul.f32 %v395, 1.442695
    %v408 = vpow.pop %v407
    %v409 = vmul.f32 %v396, 1.442695
    %v410 = vpow.pop %v409
    %v411 = vmul.f32 %v397, 1.442695
    %v412 = vpow.pop %v411
    %v413 = vmul.f32 %v398, 1.442695
    %v414 = vpow.pop %v413
    %v415 = vstv %s29
    %v416 = vmul.f32 %v415, %v400
    %v417 = vmul.f32 %v415, %v402
    %v418 = vmul.f32 %v415, %v404
    %v419 = vmul.f32 %v415, %v406
    %v420 = vmul.f32 %v415, %v408
    %v421 = vmul.f32 %v415, %v410
    %v422 = vmul.f32 %v415, %v412
    %v423 = vmul.f32 %v415, %v414
    %s424 = smul.u32 0, 64
    %v425 = vlaneseq
    %v426 = vshrl.u32 %v425, 7
    %v427 = vadd.s32 %v426, 8
    %v428 = vadd.s32 %v426, 16
    %v429 = vadd.s32 %v426, 24
    %v430 = vadd.s32 %v426, 32
    %v431 = vadd.s32 %v426, 40
    %v432 = vadd.s32 %v426, 48
    %v433 = vadd.s32 %v426, 56
    %v434 = vstv %s424
    %v435 = vadd.s32 %v434, %v426
    %v436 = vadd.s32 %v434, %v427
    %v437 = vadd.s32 %v434, %v428
    %v438 = vadd.s32 %v434, %v429
    %v439 = vadd.s32 %v434, %v430
    %v440 = vadd.s32 %v434, %v431
    %v441 = vadd.s32 %v434, %v432
    %v442 = vadd.s32 %v434, %v433
    %s443 = smul.u32 0, 64
    %v444 = vlaneseq
    %v445 = vand.u32 %v444, 127
    %v446 = vstv %s443
    %v447 = vadd.s32 %v446, %v445
    %vm448 = vcmp.eq.s32.totalorder %v435, %v447
    %vm449 = vcmp.eq.s32.totalorder %v436, %v447
    %vm450 = vcmp.eq.s32.totalorder %v437, %v447
    %vm451 = vcmp.eq.s32.totalorder %v438, %v447
    %vm452 = vcmp.eq.s32.totalorder %v439, %v447
    %vm453 = vcmp.eq.s32.totalorder %v440, %v447
    %vm454 = vcmp.eq.s32.totalorder %v441, %v447
    %vm455 = vcmp.eq.s32.totalorder %v442, %v447
    %v456 = vstv %s30
    %v457 = vsel %vm448, %v456, 0.0
    %v458 = vsel %vm449, %v456, 0.0
    %v459 = vsel %vm450, %v456, 0.0
    %v460 = vsel %vm451, %v456, 0.0
    %v461 = vsel %vm452, %v456, 0.0
    %v462 = vsel %vm453, %v456, 0.0
    %v463 = vsel %vm454, %v456, 0.0
    %v464 = vsel %vm455, %v456, 0.0
    %v465 = vadd.f32 %v416, %v457
    %v466 = vadd.f32 %v417, %v458
    %v467 = vadd.f32 %v418, %v459
    %v468 = vadd.f32 %v419, %v460
    %v469 = vadd.f32 %v420, %v461
    %v470 = vadd.f32 %v421, %v462
    %v471 = vadd.f32 %v422, %v463
    %v472 = vadd.f32 %v423, %v464
    %vm473 = vcmask 523264
    %474 = vst.msk [vmem:[#allocation5] sm:$0xff] %vm473, %v465
    %475 = vst.msk [vmem:[#allocation5 + $0x8] sm:$0xff] %vm473, %v466
    %476 = vst.msk [vmem:[#allocation5 + $0x10] sm:$0xff] %vm473, %v467
    %477 = vst.msk [vmem:[#allocation5 + $0x18] sm:$0xff] %vm473, %v468
    %478 = vst.msk [vmem:[#allocation5 + $0x20] sm:$0xff] %vm473, %v469
    %479 = vst.msk [vmem:[#allocation5 + $0x28] sm:$0xff] %vm473, %v470
    %480 = vst.msk [vmem:[#allocation5 + $0x30] sm:$0xff] %vm473, %v471
    %481 = vst.msk [vmem:[#allocation5 + $0x38] sm:$0xff] %vm473, %v472
    // Predicated region
    $region18: #{tpu_custom_call.1} parent=1 // pred_check
      _
    $region19: #{tpu_custom_call.1} parent=1 // pred_check_branch
      %483 = sbr.rel (0) target = $region21
    $region20: #{tpu_custom_call.1} parent=1 // pred_region
      %s485 = ssub.s32 1024, 1024
      %486 = vsyncadd [#allocation3], %s485
      %s487 = sshll.u32 [#allocation5], 4
      %s488 = int_to_ptr.vmem [resolvable:$true] %s487
      %493 = dma.vmem_to_hbm [thread:$0]  %s488, 1024, %s3, [#allocation3], 128, 128, 8
    $region21: #{tpu_custom_call.1} parent=1 // pred_fallthru
      _
    // Predicated region
    $region22: #{tpu_custom_call.1} parent=1 // pred_check
      _
    $region23: #{tpu_custom_call.1} parent=1 // pred_check_branch
      %495 = sbr.rel (0) target = $region25
    $region24: #{tpu_custom_call.1} parent=1 // pred_region
      %496 = dma.done [#allocation3], 1024
    $region25: #{tpu_custom_call.1} parent=1 // pred_fallthru
      _
    %497 = vsyncpa [#allocation3], 1
    %498 = vsyncpa [#allocation4], 1

</llo_original>
